<compile_context>
chip_gen: v5e
topology: v5e:2x2
jax: 0.10.0
libtpu: 0.0.40
codegen_flags: <defaults>
</compile_context>

<pallas_src>
import jax
import jax.numpy as jnp
from jax.experimental import pallas as pl
from jax.experimental.pallas import tpu as pltpu


def _round_up(x, m):
    return (x + m - 1) // m * m


def _make_cox_kernel(P, H, F2):
    """Builds the fused kernel with the (static) feature sizes closed over."""

    def kernel(x1_ref, x2_ref, w1_ref, w2_ref, bslab_ref, wslab_ref, out_ref):
        # x1_ref : (TM, In)   f32   row tile of stacked x1          (pipelined)
        # x2_ref : (TM, F2)   f32   row tile of stacked x2          (pipelined)
        # w1_ref : (In, P)    f32   sc1.weight^T                    (resident)
        # w2_ref : (P, H)     f32   sc2.weight^T                    (resident)
        # bslab  : (3, Lb)    f32   row0=b1, row1=b2, row2=[w4h, 0, ...]
        # wslab  : (Lw, 3)    f32   col0=sc3.w^T (H rows), col1=col2=sc4.w[1:] (F2 rows)
        # out    : (TM, 2)    f32   col0 = lin_pred, col1 = x2 . w4_tail
        x1 = x1_ref[...]
        x2 = x2_ref[...]

        b1 = bslab_ref[0:1, :P]          # (1, P)
        b2 = bslab_ref[1:2, :H]          # (1, H)
        head = bslab_ref[2:3, 0:2]       # (1, 2) == [w4h, 0]  (lane 1 is zero padding)

        w3col = wslab_ref[:H, 0:1]       # (H, 1)
        w4cols = wslab_ref[:F2, 1:3]     # (F2, 2), both columns == sc4.weight[0, 1:]

        # sc1 / sc2 / sc3 + relu (all on the MXU, f32 accumulation).
        h1 = jnp.maximum(
            jnp.dot(x1, w1_ref[...], preferred_element_type=jnp.float32) + b1, 0.0)
        h2 = jnp.maximum(
            jnp.dot(h1, w2_ref[...], preferred_element_type=jnp.float32) + b2, 0.0)
        h3 = jnp.maximum(
            jnp.dot(h2, w3col, preferred_element_type=jnp.float32), 0.0)      # (TM, 1)

        # sc4 over cat([h3, x2], -1):
        #   col0 = w4h * h3 + x2 . w4_tail   (lin_pred)
        #   col1 =            x2 . w4_tail   (reused for `weights`)
        x2part = jnp.dot(x2, w4cols, preferred_element_type=jnp.float32)      # (TM, 2)
        out_ref[...] = x2part + h3 * head

    return kernel


def cox_cluster_forward(x1, x2, params, *, tile_rows=1024):
    """x1: (S, B, In)  x2: (S, B, 200).  Returns (lin_pred (S,B,1), weights (B,1))."""
    S, B, In = x1.shape
    F2 = x2.shape[-1]
    M = S * B
    w1t, b1, w2t, b2, w3, w4 = params
    P = w1t.shape[1]
    H = w2t.shape[1]

    # Row tile: multiple of 128 so the (TM, *) blocks are sublane/lane legal.
    # 1024 rows gives big, near-roofline DMA transfers and still fits easily in
    # v7x's 64 MiB VMEM (2 inputs x 2 buffers x 1024 x (In + 200) x 4 B < 4 MB).
    TM = tile_rows if M >= tile_rows else _round_up(M, 128)
    M_pad = _round_up(M, TM)

    # NOTE: could stream x1/x2 as bf16 on v6e/v7x (2x HBM bytes saved);
    # kept f32 to match the torch reference numerics.
    x1f = x1.reshape(M, In).astype(jnp.float32)
    x2f = x2.reshape(M, F2).astype(jnp.float32)
    if M_pad != M:
        x1f = jnp.pad(x1f, ((0, M_pad - M), (0, 0)))
        x2f = jnp.pad(x2f, ((0, M_pad - M), (0, 0)))

    # Pack the five tiny parameter tensors into two small resident slabs.
    Lb = max(P, H, 2)
    bslab = jnp.zeros((3, Lb), jnp.float32)
    bslab = bslab.at[0, :P].set(b1)
    bslab = bslab.at[1, :H].set(b2)
    bslab = bslab.at[2, 0].set(w4[0, 0])          # w4 head; lane 1 stays 0.

    Lw = max(H, F2)
    w4t = w4[0, 1:]
    wslab = jnp.zeros((Lw, 3), jnp.float32)
    wslab = wslab.at[:H, 0].set(w3)
    wslab = wslab.at[:F2, 1].set(w4t)
    wslab = wslab.at[:F2, 2].set(w4t)

    kernel = _make_cox_kernel(P, H, F2)

    out = pl.pallas_call(
        kernel,
        out_shape=jax.ShapeDtypeStruct((M_pad, 2), jnp.float32),
        grid_spec=pltpu.PrefetchScalarGridSpec(
            num_scalar_prefetch=0,
            grid=(M_pad // TM,),
            in_specs=[
                pl.BlockSpec((TM, In), lambda i: (i, 0)),   # x1 rows (pipelined)
                pl.BlockSpec((TM, F2), lambda i: (i, 0)),   # x2 rows (pipelined)
                pl.BlockSpec((In, P), lambda i: (0, 0)),    # sc1.w^T (resident)
                pl.BlockSpec((P, H), lambda i: (0, 0)),     # sc2.w^T (resident)
                pl.BlockSpec((3, Lb), lambda i: (0, 0)),    # packed biases + w4 head
                pl.BlockSpec((Lw, 3), lambda i: (0, 0)),    # packed sc3.w / sc4 tail cols
            ],
            out_specs=pl.BlockSpec((TM, 2), lambda i: (i, 0)),
        ),
        compiler_params=pltpu.CompilerParams(
            dimension_semantics=("parallel",)),
    )(x1f, x2f, w1t, w2t, bslab, wslab)

    lin_pred = out[:M, 0:1].reshape(S, B, 1)
    # TODO(synk): torch computes x2[-1] @ w4_tail in float64; TPU Pallas has no f64, f32 used.
    weights = out[(S - 1) * B:M, 1:2]                       # (B, 1)
    return lin_pred, weights


def init_params(key, In_Nodes, Pathway_Nodes, Hidden_Nodes, Out_Nodes):
    assert Out_Nodes == 1, "torch.mm in forward requires Out_Nodes == 1"
    ks = jax.random.split(key, 6)

    def lin_init(kw, kb, fan_in, fan_out, with_bias=True):
        bound = 1.0 / jnp.sqrt(jnp.float32(fan_in))
        w = jax.random.uniform(kw, (fan_out, fan_in), jnp.float32, -bound, bound)
        b = (jax.random.uniform(kb, (fan_out,), jnp.float32, -bound, bound)
             if with_bias else None)
        return w, b

    w1, b1 = lin_init(ks[0], ks[1], In_Nodes, Pathway_Nodes)
    w2, b2 = lin_init(ks[2], ks[3], Pathway_Nodes, Hidden_Nodes)
    w3, _ = lin_init(ks[4], ks[4], Hidden_Nodes, Out_Nodes, with_bias=False)
    # sc4.weight.data.uniform_(-0.001, 0.001), shape (1, Out_Nodes + 200)
    w4 = jax.random.uniform(ks[5], (1, Out_Nodes + 200), jnp.float32, -0.001, 0.001)

    return (
        w1.T,               # (In, P)   sc1.weight^T
        b1,                 # (P,)
        w2.T,               # (P, H)    sc2.weight^T
        b2,                 # (H,)
        w3.reshape(-1),     # (H,)      sc3.weight (Out_Nodes == 1)
        w4,                 # (1, 201)  sc4.weight
    )


if __name__ == "__main__":
    In_Nodes, Pathway_Nodes, Hidden_Nodes, Out_Nodes = 16, 32, 32, 1
    S, B, F2 = 3, 4, 200  # seq (tuple length), batch, x2 feature dim (fixed at 200)

    key = jax.random.PRNGKey(0)
    kp, kx1, kx2 = jax.random.split(key, 3)

    params = init_params(kp, In_Nodes, Pathway_Nodes, Hidden_Nodes, Out_Nodes)

    # Mirror tuple_of_tensors_to_tensor: tuple of (B, feat) arrays stacked on axis 0.
    x1_tuple = tuple(jax.random.normal(jax.random.fold_in(kx1, s), (B, In_Nodes), jnp.float32)
                     for s in range(S))
    x2_tuple = tuple(jax.random.normal(jax.random.fold_in(kx2, s), (B, F2), jnp.float32)
                     for s in range(S))
    x1 = jnp.stack(list(x1_tuple), axis=0)   # (S, B, In)
    x2 = jnp.stack(list(x2_tuple), axis=0)   # (S, B, 200)

    lin_pred, weights = cox_cluster_forward(x1, x2, params)
    jax.block_until_ready((lin_pred, weights))

    # Pure-JAX reference check.
    w1t, b1, w2t, b2, w3, w4 = params
    h = jnp.maximum(x1 @ w1t + b1, 0.0)                       # (S, B, P)
    h = jnp.maximum(h @ w2t + b2, 0.0)                        # (S, B, H)
    h3 = jnp.maximum(jnp.einsum('sbh,h->sb', h, w3), 0.0)[..., None]   # (S, B, 1)
    x_cat = jnp.concatenate([h3, x2], axis=2)                 # (S, B, 201)
    lin_ref = jnp.einsum('sbc,c->sb', x_cat, w4[0])[..., None]         # (S, B, 1)
    w_ref = x2[-1] @ w4[0, 1:][:, None]                       # (B, 1)

    assert lin_pred.shape == (S, B, 1) and weights.shape == (B, 1)
    assert jnp.allclose(lin_pred, lin_ref, atol=1e-4, rtol=1e-4)
    assert jnp.allclose(weights, w_ref, atol=1e-4, rtol=1e-4)

    print("KERNEL_OK")
</pallas_src>

<mosaic_0001>
module attributes {stable_mosaic.version = 11 : i64} {
  func.func @kernel(%arg0: i32, %arg1: memref<128x16xf32, #tpu.memory_space<vmem>>, %arg2: memref<128x200xf32, #tpu.memory_space<vmem>>, %arg3: memref<16x32xf32, #tpu.memory_space<vmem>>, %arg4: memref<32x32xf32, #tpu.memory_space<vmem>>, %arg5: memref<3x32xf32, #tpu.memory_space<vmem>>, %arg6: memref<200x3xf32, #tpu.memory_space<vmem>>, %arg7: memref<128x2xf32, #tpu.memory_space<vmem>>) attributes {dimension_semantics = [#tpu.dimension_semantics<parallel>], iteration_bounds = array<i64: 1>, scalar_prefetch = 0 : i64, scratch_operands = 0 : i64, tpu.core_type = #tpu.core_type<tc>, window_params = [{transform_indices = @transform_0, window_bounds = array<i64: 128, 16>}, {transform_indices = @transform_1, window_bounds = array<i64: 128, 200>}, {pipeline_mode = #tpu.pipeline_mode<synchronous>, transform_indices = @transform_2, window_bounds = array<i64: 16, 32>}, {pipeline_mode = #tpu.pipeline_mode<synchronous>, transform_indices = @transform_3, window_bounds = array<i64: 32, 32>}, {pipeline_mode = #tpu.pipeline_mode<synchronous>, transform_indices = @transform_4, window_bounds = array<i64: 3, 32>}, {pipeline_mode = #tpu.pipeline_mode<synchronous>, transform_indices = @transform_5, window_bounds = array<i64: 200, 3>}, {transform_indices = @transform_6, window_bounds = array<i64: 128, 2>}]} {
    %c0 = arith.constant 0 : index
    %c0_0 = arith.constant 0 : index
    %0 = vector.load %arg1[%c0, %c0_0] : memref<128x16xf32, #tpu.memory_space<vmem>>, vector<128x16xf32>
    %c0_1 = arith.constant 0 : index
    %c0_2 = arith.constant 0 : index
    %1 = vector.load %arg2[%c0_1, %c0_2] : memref<128x200xf32, #tpu.memory_space<vmem>>, vector<128x200xf32>
    %c0_3 = arith.constant 0 : index
    %c0_4 = arith.constant 0 : index
    %2 = vector.load %arg5[%c0_3, %c0_4] : memref<3x32xf32, #tpu.memory_space<vmem>>, vector<1x32xf32>
    %c1 = arith.constant 1 : index
    %c0_5 = arith.constant 0 : index
    %3 = vector.load %arg5[%c1, %c0_5] : memref<3x32xf32, #tpu.memory_space<vmem>>, vector<1x32xf32>
    %c2 = arith.constant 2 : index
    %c0_6 = arith.constant 0 : index
    %4 = vector.load %arg5[%c2, %c0_6] : memref<3x32xf32, #tpu.memory_space<vmem>>, vector<1x2xf32>
    %c0_7 = arith.constant 0 : index
    %c0_8 = arith.constant 0 : index
    %5 = vector.load %arg6[%c0_7, %c0_8] : memref<200x3xf32, #tpu.memory_space<vmem>>, vector<32x1xf32>
    %c0_9 = arith.constant 0 : index
    %c1_10 = arith.constant 1 : index
    %6 = vector.load %arg6[%c0_9, %c1_10] : memref<200x3xf32, #tpu.memory_space<vmem>>, vector<200x2xf32>
    %c0_11 = arith.constant 0 : index
    %c0_12 = arith.constant 0 : index
    %7 = vector.load %arg3[%c0_11, %c0_12] : memref<16x32xf32, #tpu.memory_space<vmem>>, vector<16x32xf32>
    %cst = arith.constant dense<0.000000e+00> : vector<128x32xf32>
    %8 = tpu.matmul %0, %7, %cst {dimension_numbers = #tpu.dot_dimension_numbers<[1], [0], [0], [1], [0, 0, 1, 1], [], []>} : vector<128x16xf32>, vector<16x32xf32>, vector<128x32xf32> -> vector<128x32xf32>
    %9 = vector.broadcast %2 : vector<1x32xf32> to vector<128x32xf32>
    %10 = arith.addf %8, %9 : vector<128x32xf32>
    %cst_13 = arith.constant 0.000000e+00 : f32
    %11 = vector.broadcast %cst_13 : f32 to vector<128x32xf32>
    %12 = arith.maximumf %10, %11 : vector<128x32xf32>
    %c0_14 = arith.constant 0 : index
    %c0_15 = arith.constant 0 : index
    %13 = vector.load %arg4[%c0_14, %c0_15] : memref<32x32xf32, #tpu.memory_space<vmem>>, vector<32x32xf32>
    %cst_16 = arith.constant dense<0.000000e+00> : vector<128x32xf32>
    %14 = tpu.matmul %12, %13, %cst_16 {dimension_numbers = #tpu.dot_dimension_numbers<[1], [0], [0], [1], [0, 0, 1, 1], [], []>} : vector<128x32xf32>, vector<32x32xf32>, vector<128x32xf32> -> vector<128x32xf32>
    %15 = vector.broadcast %3 : vector<1x32xf32> to vector<128x32xf32>
    %16 = arith.addf %14, %15 : vector<128x32xf32>
    %cst_17 = arith.constant 0.000000e+00 : f32
    %17 = vector.broadcast %cst_17 : f32 to vector<128x32xf32>
    %18 = arith.maximumf %16, %17 : vector<128x32xf32>
    %cst_18 = arith.constant dense<0.000000e+00> : vector<128x1xf32>
    %19 = tpu.matmul %18, %5, %cst_18 {dimension_numbers = #tpu.dot_dimension_numbers<[1], [0], [0], [1], [0, 0, 1, 1], [], []>} : vector<128x32xf32>, vector<32x1xf32>, vector<128x1xf32> -> vector<128x1xf32>
    %cst_19 = arith.constant 0.000000e+00 : f32
    %20 = vector.broadcast %cst_19 : f32 to vector<128x1xf32>
    %21 = arith.maximumf %19, %20 : vector<128x1xf32>
    %cst_20 = arith.constant dense<0.000000e+00> : vector<128x2xf32>
    %22 = tpu.matmul %1, %6, %cst_20 {dimension_numbers = #tpu.dot_dimension_numbers<[1], [0], [0], [1], [0, 0, 1, 1], [], []>} : vector<128x200xf32>, vector<200x2xf32>, vector<128x2xf32> -> vector<128x2xf32>
    %23 = vector.broadcast %21 : vector<128x1xf32> to vector<128x2xf32>
    %24 = vector.broadcast %4 : vector<1x2xf32> to vector<128x2xf32>
    %25 = arith.mulf %23, %24 : vector<128x2xf32>
    %26 = arith.addf %22, %25 : vector<128x2xf32>
    %c0_21 = arith.constant 0 : index
    %c0_22 = arith.constant 0 : index
    %27 = vector.load %arg7[%c0_21, %c0_22] : memref<128x2xf32, #tpu.memory_space<vmem>>, vector<128x2xf32>
    tpu.vector_store %arg7[%c0_21, %c0_22], %26 {strides = array<i32>} : memref<128x2xf32, #tpu.memory_space<vmem>>, vector<128x2xf32>,
    return
  }
  func.func @transform_0(%arg0: i32) -> (i32, i32) {
    %c0_i32 = arith.constant 0 : i32
    %c0_i32_0 = arith.constant 0 : i32
    return %arg0, %c0_i32 : i32, i32
  }
  func.func @transform_1(%arg0: i32) -> (i32, i32) {
    %c0_i32 = arith.constant 0 : i32
    %c0_i32_0 = arith.constant 0 : i32
    return %arg0, %c0_i32 : i32, i32
  }
  func.func @transform_2(%arg0: i32) -> (i32, i32) {
    %c0_i32 = arith.constant 0 : i32
    %c0_i32_0 = arith.constant 0 : i32
    %c0_i32_1 = arith.constant 0 : i32
    return %c0_i32, %c0_i32_0 : i32, i32
  }
  func.func @transform_3(%arg0: i32) -> (i32, i32) {
    %c0_i32 = arith.constant 0 : i32
    %c0_i32_0 = arith.constant 0 : i32
    %c0_i32_1 = arith.constant 0 : i32
    return %c0_i32, %c0_i32_0 : i32, i32
  }
  func.func @transform_4(%arg0: i32) -> (i32, i32) {
    %c0_i32 = arith.constant 0 : i32
    %c0_i32_0 = arith.constant 0 : i32
    %c0_i32_1 = arith.constant 0 : i32
    return %c0_i32, %c0_i32_0 : i32, i32
  }
  func.func @transform_5(%arg0: i32) -> (i32, i32) {
    %c0_i32 = arith.constant 0 : i32
    %c0_i32_0 = arith.constant 0 : i32
    %c0_i32_1 = arith.constant 0 : i32
    return %c0_i32, %c0_i32_0 : i32, i32
  }
  func.func @transform_6(%arg0: i32) -> (i32, i32) {
    %c0_i32 = arith.constant 0 : i32
    %c0_i32_0 = arith.constant 0 : i32
    return %arg0, %c0_i32 : i32, i32
  }
}

</mosaic_0001>

<llo_original>
// kernel: tpu_custom_call.1
$region0: #{tpu_custom_call.1}
  #allocation0 [shape = 'u32[]', space=smem, size = 0x4, offset = 0x4, fixed_abs, tag = 'smem constant byte address 0x4 - core index']
  #allocation1 [shape = 'u32[72,128]{1,0:T(1,128)}', space=vmem, size = 0x9000, scoped, tag = 'internal scratch']
  %s0 = inlined_call_operand.vmem [shape: f32[128,16], index: 0, kind: input, shape index: {}]
  %s1 = inlined_call_operand.vmem [shape: f32[128,200], index: 1, kind: input, shape index: {}]
  %s2 = inlined_call_operand.vmem [shape: f32[16,32], index: 2, kind: input, shape index: {}]
  %s3 = inlined_call_operand.vmem [shape: f32[32,32], index: 3, kind: input, shape index: {}]
  %s4 = inlined_call_operand.vmem [shape: f32[3,32], index: 4, kind: input, shape index: {}]
  %s5 = inlined_call_operand.vmem [shape: f32[200,3], index: 5, kind: input, shape index: {}]
  %s6 = inlined_call_operand.vmem [shape: f32[128,2], index: 6, kind: output, shape index: {}]
  %s7 = sld [smem:[#allocation0]]
  $region34: #{tpu_custom_call.1} parent=0
    _
  %s9 = ssub.s32 1, %s7
  %s10 = scalar_select 0, %s9, %s7
  // Predicated region
  $region2: #{tpu_custom_call.1} parent=0 // pred_check
    _
  $region3: #{tpu_custom_call.1} parent=0 // pred_check_branch
    %12 = sbr.rel (0) target = $region5
  $region4: #{tpu_custom_call.1} parent=0 // pred_region
    _
  $region5: #{tpu_custom_call.1} parent=0 // pred_fallthru
    _
  // Predicated region
  $region6: #{tpu_custom_call.1} parent=0 // pred_check
    _
  $region7: #{tpu_custom_call.1} parent=0 // pred_check_branch
    %14 = sbr.rel (0) target = $region9
  $region8: #{tpu_custom_call.1} parent=0 // pred_region
    _
  $region9: #{tpu_custom_call.1} parent=0 // pred_fallthru
    _
  // Predicated region
  $region10: #{tpu_custom_call.1} parent=0 // pred_check
    _
  $region11: #{tpu_custom_call.1} parent=0 // pred_check_branch
    %16 = sbr.rel (0) target = $region13
  $region12: #{tpu_custom_call.1} parent=0 // pred_region
    _
  $region13: #{tpu_custom_call.1} parent=0 // pred_fallthru
    _
  // Predicated region
  $region14: #{tpu_custom_call.1} parent=0 // pred_check
    _
  $region15: #{tpu_custom_call.1} parent=0 // pred_check_branch
    %18 = sbr.rel (0) target = $region17
  $region16: #{tpu_custom_call.1} parent=0 // pred_region
    _
  $region17: #{tpu_custom_call.1} parent=0 // pred_fallthru
    _
  // Predicated region
  $region18: #{tpu_custom_call.1} parent=0 // pred_check
    _
  $region19: #{tpu_custom_call.1} parent=0 // pred_check_branch
    %20 = sbr.rel (0) target = $region21
  $region20: #{tpu_custom_call.1} parent=0 // pred_region
    _
  $region21: #{tpu_custom_call.1} parent=0 // pred_fallthru
    _
  // Predicated region
  $region22: #{tpu_custom_call.1} parent=0 // pred_check
    _
  $region23: #{tpu_custom_call.1} parent=0 // pred_check_branch
    %22 = sbr.rel (0) target = $region25
  $region24: #{tpu_custom_call.1} parent=0 // pred_region
    _
  $region25: #{tpu_custom_call.1} parent=0 // pred_fallthru
    _
  %v23 = vld [vmem:[%s0] sm:$0xff]
  %v24 = vld [vmem:[%s0 + $0x8] sm:$0xff]
  %v25 = vld [vmem:[%s0 + $0x10] sm:$0xff]
  %v26 = vld [vmem:[%s0 + $0x18] sm:$0xff]
  %v27 = vld [vmem:[%s0 + $0x20] sm:$0xff]
  %v28 = vld [vmem:[%s0 + $0x28] sm:$0xff]
  %v29 = vld [vmem:[%s0 + $0x30] sm:$0xff]
  %v30 = vld [vmem:[%s0 + $0x38] sm:$0xff]
  %v31 = vld [vmem:[%s0 + $0x40] sm:$0xff]
  %v32 = vld [vmem:[%s0 + $0x48] sm:$0xff]
  %v33 = vld [vmem:[%s0 + $0x50] sm:$0xff]
  %v34 = vld [vmem:[%s0 + $0x58] sm:$0xff]
  %v35 = vld [vmem:[%s0 + $0x60] sm:$0xff]
  %v36 = vld [vmem:[%s0 + $0x68] sm:$0xff]
  %v37 = vld [vmem:[%s0 + $0x70] sm:$0xff]
  %v38 = vld [vmem:[%s0 + $0x78] sm:$0xff]
  %v39 = vld [vmem:[%s1] sm:$0xff]
  %v40 = vld [vmem:[%s1 + $0x8] sm:$0xff]
  %v41 = vld [vmem:[%s1 + $0x10] sm:$0xff]
  %v42 = vld [vmem:[%s1 + $0x18] sm:$0xff]
  %v43 = vld [vmem:[%s1 + $0x20] sm:$0xff]
  %v44 = vld [vmem:[%s1 + $0x28] sm:$0xff]
  %v45 = vld [vmem:[%s1 + $0x30] sm:$0xff]
  %v46 = vld [vmem:[%s1 + $0x38] sm:$0xff]
  %v47 = vld [vmem:[%s1 + $0x40] sm:$0xff]
  %v48 = vld [vmem:[%s1 + $0x48] sm:$0xff]
  %v49 = vld [vmem:[%s1 + $0x50] sm:$0xff]
  %v50 = vld [vmem:[%s1 + $0x58] sm:$0xff]
  %v51 = vld [vmem:[%s1 + $0x60] sm:$0xff]
  %v52 = vld [vmem:[%s1 + $0x68] sm:$0xff]
  %v53 = vld [vmem:[%s1 + $0x70] sm:$0xff]
  %v54 = vld [vmem:[%s1 + $0x78] sm:$0xff]
  %v55 = vld [vmem:[%s1 + $0x80] sm:$0xff]
  %v56 = vld [vmem:[%s1 + $0x88] sm:$0xff]
  %v57 = vld [vmem:[%s1 + $0x90] sm:$0xff]
  %v58 = vld [vmem:[%s1 + $0x98] sm:$0xff]
  %v59 = vld [vmem:[%s1 + $0xa0] sm:$0xff]
  %v60 = vld [vmem:[%s1 + $0xa8] sm:$0xff]
  %v61 = vld [vmem:[%s1 + $0xb0] sm:$0xff]
  %v62 = vld [vmem:[%s1 + $0xb8] sm:$0xff]
  %v63 = vld [vmem:[%s1 + $0xc0] sm:$0xff]
  %v64 = vld [vmem:[%s1 + $0xc8] sm:$0xff]
  %v65 = vld [vmem:[%s1 + $0xd0] sm:$0xff]
  %v66 = vld [vmem:[%s1 + $0xd8] sm:$0xff]
  %v67 = vld [vmem:[%s1 + $0xe0] sm:$0xff]
  %v68 = vld [vmem:[%s1 + $0xe8] sm:$0xff]
  %v69 = vld [vmem:[%s1 + $0xf0] sm:$0xff]
  %v70 = vld [vmem:[%s1 + $0xf8] sm:$0xff]
  %v71 = vld [vmem:[%s4] sm:$0x1]
  %v72 = vld [vmem:[%s4 + $0x1] sm:$0x1]
  %v73 = vld [vmem:[%s4 + $0x2] sm:$0x1]
  %v74 = vld [vmem:[%s5] sm:$0xff]
  %v75 = vld [vmem:[%s5 + $0x8] sm:$0xff]
  %v76 = vld [vmem:[%s5 + $0x10] sm:$0xff]
  %v77 = vld [vmem:[%s5 + $0x18] sm:$0xff]
  %v78 = vld [vmem:[%s5 + $0x20] sm:$0xff]
  %v79 = vld [vmem:[%s5 + $0x28] sm:$0xff]
  %v80 = vld [vmem:[%s5 + $0x30] sm:$0xff]
  %v81 = vld [vmem:[%s5 + $0x38] sm:$0xff]
  %v82 = vld [vmem:[%s5 + $0x40] sm:$0xff]
  %v83 = vld [vmem:[%s5 + $0x48] sm:$0xff]
  %v84 = vld [vmem:[%s5 + $0x50] sm:$0xff]
  %v85 = vld [vmem:[%s5 + $0x58] sm:$0xff]
  %v86 = vld [vmem:[%s5 + $0x60] sm:$0xff]
  %v87 = vld [vmem:[%s5 + $0x68] sm:$0xff]
  %v88 = vld [vmem:[%s5 + $0x70] sm:$0xff]
  %v89 = vld [vmem:[%s5 + $0x78] sm:$0xff]
  %v90 = vld [vmem:[%s5 + $0x80] sm:$0xff]
  %v91 = vld [vmem:[%s5 + $0x88] sm:$0xff]
  %v92 = vld [vmem:[%s5 + $0x90] sm:$0xff]
  %v93 = vld [vmem:[%s5 + $0x98] sm:$0xff]
  %v94 = vld [vmem:[%s5 + $0xa0] sm:$0xff]
  %v95 = vld [vmem:[%s5 + $0xa8] sm:$0xff]
  %v96 = vld [vmem:[%s5 + $0xb0] sm:$0xff]
  %v97 = vld [vmem:[%s5 + $0xb8] sm:$0xff]
  %v98 = vld [vmem:[%s5 + $0xc0] sm:$0xff]
  %v99 = vld [vmem:[%s2] sm:$0xff]
  %v100 = vld [vmem:[%s2 + $0x8] sm:$0xff]
  %v101 = vperm.slane %v71, 0
  %vm102 = vcmask 130048
  %v104 = vsel %vm102, %v23, 0
  %v107 = vsel %vm102, %v24, 0
  %v110 = vsel %vm102, %v25, 0
  %v113 = vsel %vm102, %v26, 0
  %v116 = vsel %vm102, %v27, 0
  %v119 = vsel %vm102, %v28, 0
  %v122 = vsel %vm102, %v29, 0
  %v125 = vsel %vm102, %v30, 0
  %v128 = vsel %vm102, %v31, 0
  %v131 = vsel %vm102, %v32, 0
  %v134 = vsel %vm102, %v33, 0
  %v137 = vsel %vm102, %v34, 0
  %v140 = vsel %vm102, %v35, 0
  %v143 = vsel %vm102, %v36, 0
  %v146 = vsel %vm102, %v37, 0
  %v149 = vsel %vm102, %v38, 0
  %151 = vmatpush.msra.mxu0 0.0
  %152 = vmatpush.msra.mxu0 0.0
  %153 = vmatpush.msra.mxu0 0.0
  %154 = vmatpush.msra.mxu0 0.0
  %155 = vmatpush.msra.mxu0 0.0
  %156 = vmatpush.msra.mxu0 0.0
  %157 = vmatpush.msra.mxu0 0.0
  %158 = vmatpush.msra.mxu0 0.0
  %159 = vmatpush.msra.mxu0 0.0
  %160 = vmatpush.msra.mxu0 0.0
  %161 = vmatpush.msra.mxu0 0.0
  %162 = vmatpush.msra.mxu0 0.0
  %163 = vmatpush.msra.mxu0 0.0
  %164 = vmatpush.msra.mxu0 0.0
  %165 = vmatpush.msra.mxu0 %v100
  %166 = vmatpush.msra.mxu0 %v99
  %167 = vmatmul.f32.gmra.mxu0 %v104
  %v168 = vpop.f32.mrf.mxu0
  %v169 = vadd.f32 %v101, %v168
  %170 = vmatmul.f32.gmra.mxu0 %v107
  %v171 = vpop.f32.mrf.mxu0
  %v172 = vadd.f32 %v101, %v171
  %173 = vmatmul.f32.gmra.mxu0 %v110
  %v174 = vpop.f32.mrf.mxu0
  %v175 = vadd.f32 %v101, %v174
  %176 = vmatmul.f32.gmra.mxu0 %v113
  %v177 = vpop.f32.mrf.mxu0
  %v178 = vadd.f32 %v101, %v177
  %179 = vmatmul.f32.gmra.mxu0 %v116
  %v180 = vpop.f32.mrf.mxu0
  %v181 = vadd.f32 %v101, %v180
  %182 = vmatmul.f32.gmra.mxu0 %v119
  %v183 = vpop.f32.mrf.mxu0
  %v184 = vadd.f32 %v101, %v183
  %185 = vmatmul.f32.gmra.mxu0 %v122
  %v186 = vpop.f32.mrf.mxu0
  %v187 = vadd.f32 %v101, %v186
  %188 = vmatmul.f32.gmra.mxu0 %v125
  %v189 = vpop.f32.mrf.mxu0
  %v190 = vadd.f32 %v101, %v189
  %191 = vmatmul.f32.gmra.mxu0 %v128
  %v192 = vpop.f32.mrf.mxu0
  %v193 = vadd.f32 %v101, %v192
  %194 = vmatmul.f32.gmra.mxu0 %v131
  %v195 = vpop.f32.mrf.mxu0
  %v196 = vadd.f32 %v101, %v195
  %197 = vmatmul.f32.gmra.mxu0 %v134
  %v198 = vpop.f32.mrf.mxu0
  %v199 = vadd.f32 %v101, %v198
  %200 = vmatmul.f32.gmra.mxu0 %v137
  %v201 = vpop.f32.mrf.mxu0
  %v202 = vadd.f32 %v101, %v201
  %203 = vmatmul.f32.gmra.mxu0 %v140
  %v204 = vpop.f32.mrf.mxu0
  %v205 = vadd.f32 %v101, %v204
  %206 = vmatmul.f32.gmra.mxu0 %v143
  %v207 = vpop.f32.mrf.mxu0
  %v208 = vadd.f32 %v101, %v207
  %209 = vmatmul.f32.gmra.mxu0 %v146
  %v210 = vpop.f32.mrf.mxu0
  %v211 = vadd.f32 %v101, %v210
  %212 = vmatmul.f32.gmra.mxu0 %v149
  %v213 = vpop.f32.mrf.mxu0
  %v214 = vadd.f32 %v101, %v213
  %215 = vdwg.mxu0
  %v216 = vmax.f32 %v169, 0.0
  %v217 = vmax.f32 %v172, 0.0
  %v218 = vmax.f32 %v175, 0.0
  %v219 = vmax.f32 %v178, 0.0
  %v220 = vmax.f32 %v181, 0.0
  %v221 = vmax.f32 %v184, 0.0
  %v222 = vmax.f32 %v187, 0.0
  %v223 = vmax.f32 %v190, 0.0
  %v224 = vmax.f32 %v193, 0.0
  %v225 = vmax.f32 %v196, 0.0
  %v226 = vmax.f32 %v199, 0.0
  %v227 = vmax.f32 %v202, 0.0
  %v228 = vmax.f32 %v205, 0.0
  %v229 = vmax.f32 %v208, 0.0
  %v230 = vmax.f32 %v211, 0.0
  %v231 = vmax.f32 %v214, 0.0
  %v232 = vld [vmem:[%s3] sm:$0xff]
  %v233 = vld [vmem:[%s3 + $0x8] sm:$0xff]
  %v234 = vld [vmem:[%s3 + $0x10] sm:$0xff]
  %v235 = vld [vmem:[%s3 + $0x18] sm:$0xff]
  %v236 = vperm.slane %v72, 0
  %vm237 = vcmask 261120
  %v239 = vsel %vm237, %v216, 0
  %v242 = vsel %vm237, %v217, 0
  %v245 = vsel %vm237, %v218, 0
  %v248 = vsel %vm237, %v219, 0
  %v251 = vsel %vm237, %v220, 0
  %v254 = vsel %vm237, %v221, 0
  %v257 = vsel %vm237, %v222, 0
  %v260 = vsel %vm237, %v223, 0
  %v263 = vsel %vm237, %v224, 0
  %v266 = vsel %vm237, %v225, 0
  %v269 = vsel %vm237, %v226, 0
  %v272 = vsel %vm237, %v227, 0
  %v275 = vsel %vm237, %v228, 0
  %v278 = vsel %vm237, %v229, 0
  %v281 = vsel %vm237, %v230, 0
  %v284 = vsel %vm237, %v231, 0
  %286 = vmatpush.msra.mxu0 0.0
  %287 = vmatpush.msra.mxu0 0.0
  %288 = vmatpush.msra.mxu0 0.0
  %289 = vmatpush.msra.mxu0 0.0
  %290 = vmatpush.msra.mxu0 0.0
  %291 = vmatpush.msra.mxu0 0.0
  %292 = vmatpush.msra.mxu0 0.0
  %293 = vmatpush.msra.mxu0 0.0
  %294 = vmatpush.msra.mxu0 0.0
  %295 = vmatpush.msra.mxu0 0.0
  %296 = vmatpush.msra.mxu0 0.0
  %297 = vmatpush.msra.mxu0 0.0
  %298 = vmatpush.msra.mxu0 %v235
  %299 = vmatpush.msra.mxu0 %v234
  %300 = vmatpush.msra.mxu0 %v233
  %301 = vmatpush.msra.mxu0 %v232
  %302 = vmatmul.f32.gmra.mxu0 %v239
  %v303 = vpop.f32.mrf.mxu0
  %v304 = vadd.f32 %v236, %v303
  %305 = vmatmul.f32.gmra.mxu0 %v242
  %v306 = vpop.f32.mrf.mxu0
  %v307 = vadd.f32 %v236, %v306
  %308 = vmatmul.f32.gmra.mxu0 %v245
  %v309 = vpop.f32.mrf.mxu0
  %v310 = vadd.f32 %v236, %v309
  %311 = vmatmul.f32.gmra.mxu0 %v248
  %v312 = vpop.f32.mrf.mxu0
  %v313 = vadd.f32 %v236, %v312
  %314 = vmatmul.f32.gmra.mxu0 %v251
  %v315 = vpop.f32.mrf.mxu0
  %v316 = vadd.f32 %v236, %v315
  %317 = vmatmul.f32.gmra.mxu0 %v254
  %v318 = vpop.f32.mrf.mxu0
  %v319 = vadd.f32 %v236, %v318
  %320 = vmatmul.f32.gmra.mxu0 %v257
  %v321 = vpop.f32.mrf.mxu0
  %v322 = vadd.f32 %v236, %v321
  %323 = vmatmul.f32.gmra.mxu0 %v260
  %v324 = vpop.f32.mrf.mxu0
  %v325 = vadd.f32 %v236, %v324
  %326 = vmatmul.f32.gmra.mxu0 %v263
  %v327 = vpop.f32.mrf.mxu0
  %v328 = vadd.f32 %v236, %v327
  %329 = vmatmul.f32.gmra.mxu0 %v266
  %v330 = vpop.f32.mrf.mxu0
  %v331 = vadd.f32 %v236, %v330
  %332 = vmatmul.f32.gmra.mxu0 %v269
  %v333 = vpop.f32.mrf.mxu0
  %v334 = vadd.f32 %v236, %v333
  %335 = vmatmul.f32.gmra.mxu0 %v272
  %v336 = vpop.f32.mrf.mxu0
  %v337 = vadd.f32 %v236, %v336
  %338 = vmatmul.f32.gmra.mxu0 %v275
  %v339 = vpop.f32.mrf.mxu0
  %v340 = vadd.f32 %v236, %v339
  %341 = vmatmul.f32.gmra.mxu0 %v278
  %v342 = vpop.f32.mrf.mxu0
  %v343 = vadd.f32 %v236, %v342
  %344 = vmatmul.f32.gmra.mxu0 %v281
  %v345 = vpop.f32.mrf.mxu0
  %v346 = vadd.f32 %v236, %v345
  %347 = vmatmul.f32.gmra.mxu0 %v284
  %v348 = vpop.f32.mrf.mxu0
  %v349 = vadd.f32 %v236, %v348
  %350 = vdwg.mxu0
  %v351 = vmax.f32 %v304, 0.0
  %v352 = vmax.f32 %v307, 0.0
  %v353 = vmax.f32 %v310, 0.0
  %v354 = vmax.f32 %v313, 0.0
  %v355 = vmax.f32 %v316, 0.0
  %v356 = vmax.f32 %v319, 0.0
  %v357 = vmax.f32 %v322, 0.0
  %v358 = vmax.f32 %v325, 0.0
  %v359 = vmax.f32 %v328, 0.0
  %v360 = vmax.f32 %v331, 0.0
  %v361 = vmax.f32 %v334, 0.0
  %v362 = vmax.f32 %v337, 0.0
  %v363 = vmax.f32 %v340, 0.0
  %v364 = vmax.f32 %v343, 0.0
  %v365 = vmax.f32 %v346, 0.0
  %v366 = vmax.f32 %v349, 0.0
  %v368 = vsel %vm237, %v351, 0
  %v371 = vsel %vm237, %v352, 0
  %v374 = vsel %vm237, %v353, 0
  %v377 = vsel %vm237, %v354, 0
  %v380 = vsel %vm237, %v355, 0
  %v383 = vsel %vm237, %v356, 0
  %v386 = vsel %vm237, %v357, 0
  %v389 = vsel %vm237, %v358, 0
  %v392 = vsel %vm237, %v359, 0
  %v395 = vsel %vm237, %v360, 0
  %v398 = vsel %vm237, %v361, 0
  %v401 = vsel %vm237, %v362, 0
  %v404 = vsel %vm237, %v363, 0
  %v407 = vsel %vm237, %v364, 0
  %v410 = vsel %vm237, %v365, 0
  %v413 = vsel %vm237, %v366, 0
  %415 = vmatpush.msra.mxu0 0.0
  %416 = vmatpush.msra.mxu0 0.0
  %417 = vmatpush.msra.mxu0 0.0
  %418 = vmatpush.msra.mxu0 0.0
  %419 = vmatpush.msra.mxu0 0.0
  %420 = vmatpush.msra.mxu0 0.0
  %421 = vmatpush.msra.mxu0 0.0
  %422 = vmatpush.msra.mxu0 0.0
  %423 = vmatpush.msra.mxu0 0.0
  %424 = vmatpush.msra.mxu0 0.0
  %425 = vmatpush.msra.mxu0 0.0
  %426 = vmatpush.msra.mxu0 0.0
  %427 = vmatpush.msra.mxu0 %v77
  %428 = vmatpush.msra.mxu0 %v76
  %429 = vmatpush.msra.mxu0 %v75
  %430 = vmatpush.msra.mxu0 %v74
  %431 = vmatmul.f32.gmra.mxu0 %v368
  %v432 = vpop.f32.mrf.mxu0
  %v433 = vadd.f32 0.0, %v432
  %434 = vmatmul.f32.gmra.mxu0 %v371
  %v435 = vpop.f32.mrf.mxu0
  %v436 = vadd.f32 0.0, %v435
  %437 = vmatmul.f32.gmra.mxu0 %v374
  %v438 = vpop.f32.mrf.mxu0
  %v439 = vadd.f32 0.0, %v438
  %440 = vmatmul.f32.gmra.mxu0 %v377
  %v441 = vpop.f32.mrf.mxu0
  %v442 = vadd.f32 0.0, %v441
  %443 = vmatmul.f32.gmra.mxu0 %v380
  %v444 = vpop.f32.mrf.mxu0
  %v445 = vadd.f32 0.0, %v444
  %446 = vmatmul.f32.gmra.mxu0 %v383
  %v447 = vpop.f32.mrf.mxu0
  %v448 = vadd.f32 0.0, %v447
  %449 = vmatmul.f32.gmra.mxu0 %v386
  %v450 = vpop.f32.mrf.mxu0
  %v451 = vadd.f32 0.0, %v450
  %452 = vmatmul.f32.gmra.mxu0 %v389
  %v453 = vpop.f32.mrf.mxu0
  %v454 = vadd.f32 0.0, %v453
  %455 = vmatmul.f32.gmra.mxu0 %v392
  %v456 = vpop.f32.mrf.mxu0
  %v457 = vadd.f32 0.0, %v456
  %458 = vmatmul.f32.gmra.mxu0 %v395
  %v459 = vpop.f32.mrf.mxu0
  %v460 = vadd.f32 0.0, %v459
  %461 = vmatmul.f32.gmra.mxu0 %v398
  %v462 = vpop.f32.mrf.mxu0
  %v463 = vadd.f32 0.0, %v462
  %464 = vmatmul.f32.gmra.mxu0 %v401
  %v465 = vpop.f32.mrf.mxu0
  %v466 = vadd.f32 0.0, %v465
  %467 = vmatmul.f32.gmra.mxu0 %v404
  %v468 = vpop.f32.mrf.mxu0
  %v469 = vadd.f32 0.0, %v468
  %470 = vmatmul.f32.gmra.mxu0 %v407
  %v471 = vpop.f32.mrf.mxu0
  %v472 = vadd.f32 0.0, %v471
  %473 = vmatmul.f32.gmra.mxu0 %v410
  %v474 = vpop.f32.mrf.mxu0
  %v475 = vadd.f32 0.0, %v474
  %476 = vmatmul.f32.gmra.mxu0 %v413
  %v477 = vpop.f32.mrf.mxu0
  %v478 = vadd.f32 0.0, %v477
  %479 = vdwg.mxu0
  %v480 = vmax.f32 %v433, 0.0
  %v481 = vmax.f32 %v436, 0.0
  %v482 = vmax.f32 %v439, 0.0
  %v483 = vmax.f32 %v442, 0.0
  %v484 = vmax.f32 %v445, 0.0
  %v485 = vmax.f32 %v448, 0.0
  %v486 = vmax.f32 %v451, 0.0
  %v487 = vmax.f32 %v454, 0.0
  %v488 = vmax.f32 %v457, 0.0
  %v489 = vmax.f32 %v460, 0.0
  %v490 = vmax.f32 %v463, 0.0
  %v491 = vmax.f32 %v466, 0.0
  %v492 = vmax.f32 %v469, 0.0
  %v493 = vmax.f32 %v472, 0.0
  %v494 = vmax.f32 %v475, 0.0
  %v495 = vmax.f32 %v478, 0.0
  %497 = vset.pattern.permute.xlu0 0
  %498 = vperm.xlu0 %497, %v480
  %v499 = vpop.permute.xlu0 %498
  %502 = vset.pattern.permute.xlu0 0
  %503 = vperm.xlu0 %502, %v481
  %v504 = vpop.permute.xlu0 %503
  %507 = vset.pattern.permute.xlu0 0
  %508 = vperm.xlu0 %507, %v482
  %v509 = vpop.permute.xlu0 %508
  %512 = vset.pattern.permute.xlu0 0
  %513 = vperm.xlu0 %512, %v483
  %v514 = vpop.permute.xlu0 %513
  %517 = vset.pattern.permute.xlu0 0
  %518 = vperm.xlu0 %517, %v484
  %v519 = vpop.permute.xlu0 %518
  %522 = vset.pattern.permute.xlu0 0
  %523 = vperm.xlu0 %522, %v485
  %v524 = vpop.permute.xlu0 %523
  %527 = vset.pattern.permute.xlu0 0
  %528 = vperm.xlu0 %527, %v486
  %v529 = vpop.permute.xlu0 %528
  %532 = vset.pattern.permute.xlu0 0
  %533 = vperm.xlu0 %532, %v487
  %v534 = vpop.permute.xlu0 %533
  %537 = vset.pattern.permute.xlu0 0
  %538 = vperm.xlu0 %537, %v488
  %v539 = vpop.permute.xlu0 %538
  %542 = vset.pattern.permute.xlu0 0
  %543 = vperm.xlu0 %542, %v489
  %v544 = vpop.permute.xlu0 %543
  %547 = vset.pattern.permute.xlu0 0
  %548 = vperm.xlu0 %547, %v490
  %v549 = vpop.permute.xlu0 %548
  %552 = vset.pattern.permute.xlu0 0
  %553 = vperm.xlu0 %552, %v491
  %v554 = vpop.permute.xlu0 %553
  %557 = vset.pattern.permute.xlu0 0
  %558 = vperm.xlu0 %557, %v492
  %v559 = vpop.permute.xlu0 %558
  %562 = vset.pattern.permute.xlu0 0
  %563 = vperm.xlu0 %562, %v493
  %v564 = vpop.permute.xlu0 %563
  %567 = vset.pattern.permute.xlu0 0
  %568 = vperm.xlu0 %567, %v494
  %v569 = vpop.permute.xlu0 %568
  %572 = vset.pattern.permute.xlu0 0
  %573 = vperm.xlu0 %572, %v495
  %v574 = vpop.permute.xlu0 %573
  %v576 = vperm.slane %v73, 0
  %v577 = vmul.f32 %v499, %v576
  %v578 = vmul.f32 %v504, %v576
  %v579 = vmul.f32 %v509, %v576
  %v580 = vmul.f32 %v514, %v576
  %v581 = vmul.f32 %v519, %v576
  %v582 = vmul.f32 %v524, %v576
  %v583 = vmul.f32 %v529, %v576
  %v584 = vmul.f32 %v534, %v576
  %v585 = vmul.f32 %v539, %v576
  %v586 = vmul.f32 %v544, %v576
  %v587 = vmul.f32 %v549, %v576
  %v588 = vmul.f32 %v554, %v576
  %v589 = vmul.f32 %v559, %v576
  %v590 = vmul.f32 %v564, %v576
  %v591 = vmul.f32 %v569, %v576
  %v592 = vmul.f32 %v574, %v576
  %618 = vrot.lane.b32.xlu0 %v74, 127
  %v619 = vpop.permute.xlu0 %618
  %620 = vrot.lane.b32.xlu0 %v75, 127
  %v621 = vpop.permute.xlu0 %620
  %622 = vrot.lane.b32.xlu0 %v76, 127
  %v623 = vpop.permute.xlu0 %622
  %624 = vrot.lane.b32.xlu0 %v77, 127
  %v625 = vpop.permute.xlu0 %624
  %626 = vrot.lane.b32.xlu0 %v78, 127
  %v627 = vpop.permute.xlu0 %626
  %628 = vrot.lane.b32.xlu0 %v79, 127
  %v629 = vpop.permute.xlu0 %628
  %630 = vrot.lane.b32.xlu0 %v80, 127
  %v631 = vpop.permute.xlu0 %630
  %632 = vrot.lane.b32.xlu0 %v81, 127
  %v633 = vpop.permute.xlu0 %632
  %634 = vrot.lane.b32.xlu0 %v82, 127
  %v635 = vpop.permute.xlu0 %634
  %636 = vrot.lane.b32.xlu0 %v83, 127
  %v637 = vpop.permute.xlu0 %636
  %638 = vrot.lane.b32.xlu0 %v84, 127
  %v639 = vpop.permute.xlu0 %638
  %640 = vrot.lane.b32.xlu0 %v85, 127
  %v641 = vpop.permute.xlu0 %640
  %642 = vrot.lane.b32.xlu0 %v86, 127
  %v643 = vpop.permute.xlu0 %642
  %644 = vrot.lane.b32.xlu0 %v87, 127
  %v645 = vpop.permute.xlu0 %644
  %646 = vrot.lane.b32.xlu0 %v88, 127
  %v647 = vpop.permute.xlu0 %646
  %648 = vrot.lane.b32.xlu0 %v89, 127
  %v649 = vpop.permute.xlu0 %648
  %650 = vrot.lane.b32.xlu0 %v90, 127
  %v651 = vpop.permute.xlu0 %650
  %652 = vrot.lane.b32.xlu0 %v91, 127
  %v653 = vpop.permute.xlu0 %652
  %654 = vrot.lane.b32.xlu0 %v92, 127
  %v655 = vpop.permute.xlu0 %654
  %656 = vrot.lane.b32.xlu0 %v93, 127
  %v657 = vpop.permute.xlu0 %656
  %658 = vrot.lane.b32.xlu0 %v94, 127
  %v659 = vpop.permute.xlu0 %658
  %660 = vrot.lane.b32.xlu0 %v95, 127
  %v661 = vpop.permute.xlu0 %660
  %662 = vrot.lane.b32.xlu0 %v96, 127
  %v663 = vpop.permute.xlu0 %662
  %664 = vrot.lane.b32.xlu0 %v97, 127
  %v665 = vpop.permute.xlu0 %664
  %666 = vrot.lane.b32.xlu0 %v98, 127
  %v667 = vpop.permute.xlu0 %666
  %vm693 = vcmask 588800
  %v695 = vsel %vm693, %v40, 0
  %v698 = vsel %vm693, %v42, 0
  %v701 = vsel %vm693, %v44, 0
  %v704 = vsel %vm693, %v46, 0
  %v707 = vsel %vm693, %v48, 0
  %v710 = vsel %vm693, %v50, 0
  %v713 = vsel %vm693, %v52, 0
  %v716 = vsel %vm693, %v54, 0
  %v719 = vsel %vm693, %v56, 0
  %v722 = vsel %vm693, %v58, 0
  %v725 = vsel %vm693, %v60, 0
  %v728 = vsel %vm693, %v62, 0
  %v731 = vsel %vm693, %v64, 0
  %v734 = vsel %vm693, %v66, 0
  %v737 = vsel %vm693, %v68, 0
  %v740 = vsel %vm693, %v70, 0
  %742 = vmatpush.msra.mxu0 %v649
  %743 = vmatpush.msra.mxu0 %v647
  %744 = vmatpush.msra.mxu0 %v645
  %745 = vmatpush.msra.mxu0 %v643
  %746 = vmatpush.msra.mxu0 %v641
  %747 = vmatpush.msra.mxu0 %v639
  %748 = vmatpush.msra.mxu0 %v637
  %749 = vmatpush.msra.mxu0 %v635
  %750 = vmatpush.msra.mxu0 %v633
  %751 = vmatpush.msra.mxu0 %v631
  %752 = vmatpush.msra.mxu0 %v629
  %753 = vmatpush.msra.mxu0 %v627
  %754 = vmatpush.msra.mxu0 %v625
  %755 = vmatpush.msra.mxu0 %v623
  %756 = vmatpush.msra.mxu0 %v621
  %757 = vmatpush.msra.mxu0 %v619
  %758 = vmatmul.f32.gmra.mxu0 %v39
  %v759 = vpop.f32.mrf.mxu0
  %v760 = vadd.f32 %v577, %v759
  %761 = vmatmul.f32.gmra.mxu0 %v41
  %v762 = vpop.f32.mrf.mxu0
  %v763 = vadd.f32 %v578, %v762
  %764 = vmatmul.f32.gmra.mxu0 %v43
  %v765 = vpop.f32.mrf.mxu0
  %v766 = vadd.f32 %v579, %v765
  %767 = vmatmul.f32.gmra.mxu0 %v45
  %v768 = vpop.f32.mrf.mxu0
  %v769 = vadd.f32 %v580, %v768
  %770 = vmatmul.f32.gmra.mxu0 %v47
  %v771 = vpop.f32.mrf.mxu0
  %v772 = vadd.f32 %v581, %v771
  %773 = vmatmul.f32.gmra.mxu0 %v49
  %v774 = vpop.f32.mrf.mxu0
  %v775 = vadd.f32 %v582, %v774
  %776 = vmatmul.f32.gmra.mxu0 %v51
  %v777 = vpop.f32.mrf.mxu0
  %v778 = vadd.f32 %v583, %v777
  %779 = vmatmul.f32.gmra.mxu0 %v53
  %v780 = vpop.f32.mrf.mxu0
  %v781 = vadd.f32 %v584, %v780
  %782 = vmatmul.f32.gmra.mxu0 %v55
  %v783 = vpop.f32.mrf.mxu0
  %v784 = vadd.f32 %v585, %v783
  %785 = vmatmul.f32.gmra.mxu0 %v57
  %v786 = vpop.f32.mrf.mxu0
  %v787 = vadd.f32 %v586, %v786
  %788 = vmatmul.f32.gmra.mxu0 %v59
  %v789 = vpop.f32.mrf.mxu0
  %v790 = vadd.f32 %v587, %v789
  %791 = vmatmul.f32.gmra.mxu0 %v61
  %v792 = vpop.f32.mrf.mxu0
  %v793 = vadd.f32 %v588, %v792
  %794 = vmatmul.f32.gmra.mxu0 %v63
  %v795 = vpop.f32.mrf.mxu0
  %v796 = vadd.f32 %v589, %v795
  %797 = vmatmul.f32.gmra.mxu0 %v65
  %v798 = vpop.f32.mrf.mxu0
  %v799 = vadd.f32 %v590, %v798
  %800 = vmatmul.f32.gmra.mxu0 %v67
  %v801 = vpop.f32.mrf.mxu0
  %v802 = vadd.f32 %v591, %v801
  %803 = vmatmul.f32.gmra.mxu0 %v69
  %v804 = vpop.f32.mrf.mxu0
  %v805 = vadd.f32 %v592, %v804
  %806 = vdwg.mxu0
  %807 = vmatpush.msra.mxu0 0.0
  %808 = vmatpush.msra.mxu0 0.0
  %809 = vmatpush.msra.mxu0 0.0
  %810 = vmatpush.msra.mxu0 0.0
  %811 = vmatpush.msra.mxu0 0.0
  %812 = vmatpush.msra.mxu0 0.0
  %813 = vmatpush.msra.mxu0 0.0
  %814 = vmatpush.msra.mxu0 %v667
  %815 = vmatpush.msra.mxu0 %v665
  %816 = vmatpush.msra.mxu0 %v663
  %817 = vmatpush.msra.mxu0 %v661
  %818 = vmatpush.msra.mxu0 %v659
  %819 = vmatpush.msra.mxu0 %v657
  %820 = vmatpush.msra.mxu0 %v655
  %821 = vmatpush.msra.mxu0 %v653
  %822 = vmatpush.msra.mxu0 %v651
  %823 = vmatmul.f32.gmra.mxu0 %v695
  %v824 = vpop.f32.mrf.mxu0
  %v825 = vadd.f32 %v760, %v824
  %826 = vmatmul.f32.gmra.mxu0 %v698
  %v827 = vpop.f32.mrf.mxu0
  %v828 = vadd.f32 %v763, %v827
  %829 = vmatmul.f32.gmra.mxu0 %v701
  %v830 = vpop.f32.mrf.mxu0
  %v831 = vadd.f32 %v766, %v830
  %832 = vmatmul.f32.gmra.mxu0 %v704
  %v833 = vpop.f32.mrf.mxu0
  %v834 = vadd.f32 %v769, %v833
  %835 = vmatmul.f32.gmra.mxu0 %v707
  %v836 = vpop.f32.mrf.mxu0
  %v837 = vadd.f32 %v772, %v836
  %838 = vmatmul.f32.gmra.mxu0 %v710
  %v839 = vpop.f32.mrf.mxu0
  %v840 = vadd.f32 %v775, %v839
  %841 = vmatmul.f32.gmra.mxu0 %v713
  %v842 = vpop.f32.mrf.mxu0
  %v843 = vadd.f32 %v778, %v842
  %844 = vmatmul.f32.gmra.mxu0 %v716
  %v845 = vpop.f32.mrf.mxu0
  %v846 = vadd.f32 %v781, %v845
  %847 = vmatmul.f32.gmra.mxu0 %v719
  %v848 = vpop.f32.mrf.mxu0
  %v849 = vadd.f32 %v784, %v848
  %850 = vmatmul.f32.gmra.mxu0 %v722
  %v851 = vpop.f32.mrf.mxu0
  %v852 = vadd.f32 %v787, %v851
  %853 = vmatmul.f32.gmra.mxu0 %v725
  %v854 = vpop.f32.mrf.mxu0
  %v855 = vadd.f32 %v790, %v854
  %856 = vmatmul.f32.gmra.mxu0 %v728
  %v857 = vpop.f32.mrf.mxu0
  %v858 = vadd.f32 %v793, %v857
  %859 = vmatmul.f32.gmra.mxu0 %v731
  %v860 = vpop.f32.mrf.mxu0
  %v861 = vadd.f32 %v796, %v860
  %862 = vmatmul.f32.gmra.mxu0 %v734
  %v863 = vpop.f32.mrf.mxu0
  %v864 = vadd.f32 %v799, %v863
  %865 = vmatmul.f32.gmra.mxu0 %v737
  %v866 = vpop.f32.mrf.mxu0
  %v867 = vadd.f32 %v802, %v866
  %868 = vmatmul.f32.gmra.mxu0 %v740
  %v869 = vpop.f32.mrf.mxu0
  %v870 = vadd.f32 %v805, %v869
  %871 = vdwg.mxu0
  %vm872 = vcmask 15360
  %873 = vst.msk [vmem:[%s6] sm:$0xff] %vm872, %v825
  %874 = vst.msk [vmem:[%s6 + $0x8] sm:$0xff] %vm872, %v828
  %875 = vst.msk [vmem:[%s6 + $0x10] sm:$0xff] %vm872, %v831
  %876 = vst.msk [vmem:[%s6 + $0x18] sm:$0xff] %vm872, %v834
  %877 = vst.msk [vmem:[%s6 + $0x20] sm:$0xff] %vm872, %v837
  %878 = vst.msk [vmem:[%s6 + $0x28] sm:$0xff] %vm872, %v840
  %879 = vst.msk [vmem:[%s6 + $0x30] sm:$0xff] %vm872, %v843
  %880 = vst.msk [vmem:[%s6 + $0x38] sm:$0xff] %vm872, %v846
  %881 = vst.msk [vmem:[%s6 + $0x40] sm:$0xff] %vm872, %v849
  %882 = vst.msk [vmem:[%s6 + $0x48] sm:$0xff] %vm872, %v852
  %883 = vst.msk [vmem:[%s6 + $0x50] sm:$0xff] %vm872, %v855
  %884 = vst.msk [vmem:[%s6 + $0x58] sm:$0xff] %vm872, %v858
  %885 = vst.msk [vmem:[%s6 + $0x60] sm:$0xff] %vm872, %v861
  %886 = vst.msk [vmem:[%s6 + $0x68] sm:$0xff] %vm872, %v864
  %887 = vst.msk [vmem:[%s6 + $0x70] sm:$0xff] %vm872, %v867
  %888 = vst.msk [vmem:[%s6 + $0x78] sm:$0xff] %vm872, %v870
  // Predicated region
  $region26: #{tpu_custom_call.1} parent=0 // pred_check
    _
  $region27: #{tpu_custom_call.1} parent=0 // pred_check_branch
    %890 = sbr.rel (0) target = $region29
  $region28: #{tpu_custom_call.1} parent=0 // pred_region
    _
  $region29: #{tpu_custom_call.1} parent=0 // pred_fallthru
    _
  // Predicated region
  $region30: #{tpu_custom_call.1} parent=0 // pred_check
    _
  $region31: #{tpu_custom_call.1} parent=0 // pred_check_branch
    %892 = sbr.rel (0) target = $region33
  $region32: #{tpu_custom_call.1} parent=0 // pred_region
    _
  $region33: #{tpu_custom_call.1} parent=0 // pred_fallthru
    _

</llo_original>
